<compile_context>
chip_gen: v5e
topology: v5e:2x2
jax: 0.10.0
libtpu: 0.0.40
codegen_flags: <defaults>
</compile_context>

<pallas_src>
import functools

import jax
import jax.numpy as jnp
from jax.experimental import pallas as pl
from jax.experimental.pallas import tpu as pltpu


def _round_up(x, m):
    return (x + m - 1) // m * m


# ---------------------------------------------------------------------------
# Kernel 1: bias-free linear  y = x @ w   (w is already transposed: (in, out))
# ---------------------------------------------------------------------------
def _linear_kernel(x_ref, w_ref, o_ref):
    o_ref[...] = jnp.dot(
        x_ref[...].astype(jnp.float32),
        w_ref[...].astype(jnp.float32),
        preferred_element_type=jnp.float32,
    ).astype(o_ref.dtype)


def linear_nobias(x2d, w_t, *, row_tile=256):
    """x2d: (rows, in_dim), w_t: (in_dim, out_dim) -> (rows, out_dim)."""
    rows, k = x2d.shape
    k2, n = w_t.shape
    assert k == k2, (k, k2)
    # Biggest row tile that is useful (multiple of 8 sublanes); partial last
    # block handled by Pallas via pl.cdiv — no host-side padding copy.
    tm = min(row_tile, _round_up(rows, 8))
    grid = (pl.cdiv(rows, tm),)
    return pl.pallas_call(
        _linear_kernel,
        out_shape=jax.ShapeDtypeStruct((rows, n), x2d.dtype),
        grid_spec=pltpu.PrefetchScalarGridSpec(
            num_scalar_prefetch=0,
            grid=grid,
            in_specs=[
                pl.BlockSpec((tm, k), lambda i: (i, 0)),
                pl.BlockSpec((k, n), lambda i: (0, 0)),   # weights stay resident
            ],
            out_specs=pl.BlockSpec((tm, n), lambda i: (i, 0)),
        ),
        compiler_params=pltpu.CompilerParams(
            dimension_semantics=("parallel",),
            # Leave headroom under v7x's 64 MiB physical VMEM; raises the
            # 16/32 MiB scoped defaults on v5e/v6e for bigger tiles.
            vmem_limit_bytes=48 * 1024 * 1024,
        ),
    )(x2d, w_t)


# ---------------------------------------------------------------------------
# Kernel 2: per-(batch, head) scaled-dot-product attention
#   outputs: context (B, H, Sq, dvh)  and  attention_weights (B, Sq, Sk)
#   (attention_weights = masked logits summed over heads / num_heads,
#    exactly as in the PyTorch forward)
# ---------------------------------------------------------------------------
def _mha_attn_kernel(q_ref, k_ref, v_ref, mask_ref, ctx_ref, attw_ref, acc_ref,
                     *, scale, inv_heads):
    h = pl.program_id(1)

    q = q_ref[...].astype(jnp.float32) * jnp.float32(scale)   # (Sq, dh)
    k = k_ref[...].astype(jnp.float32)                         # (Sk, dh)
    v = v_ref[...].astype(jnp.float32)                         # (Sk, dvh)
    mask = mask_ref[...]                                       # (Sq, Sk) f32, 1 = masked

    # logits = q @ k^T  (contract on the last dim of both — MXU friendly)
    logits = jax.lax.dot_general(
        q, k, (((1,), (1,)), ((), ())), preferred_element_type=jnp.float32
    )                                                          # (Sq, Sk)
    logits = jnp.where(mask > jnp.float32(0.5), jnp.float32(-1e18), logits)

    # attention_weights accumulator: resident across the head ("arbitrary") axis
    @pl.when(h == 0)
    def _init():
        acc_ref[...] = jnp.zeros_like(acc_ref)

    acc_ref[...] += logits

    @pl.when(h == pl.num_programs(1) - 1)
    def _finalize():
        attw_ref[...] = acc_ref[...] * jnp.float32(inv_heads)

    # softmax over the key axis (EUP exp, per-row reciprocal instead of divide)
    m = jnp.max(logits, axis=-1, keepdims=True)
    e = jnp.exp(logits - m)
    denom = jnp.sum(e, axis=-1, keepdims=True)
    w = e * pl.reciprocal(denom, approx=False)
    # TODO(synk): attention dropout skipped (module default p=0.0 / inference).

    ctx_ref[...] = jnp.dot(w, v, preferred_element_type=jnp.float32).astype(ctx_ref.dtype)


def multi_head_attention(queries, keys, values, mask, wq, wk, wv, wo, num_heads):
    """Pallas forward of the PyTorch MultiHeadAttention module.

    queries: (B, Sq, Din), keys/values: (B, Sk, Din)
    mask: bool (B, Sq, Sk), True = masked (filled with -1e18), or None
    wq/wk/wv/wo: PyTorch-layout weights (out_features, in_features), bias-free.
    Returns (outputs (B, Sq, Dout), attention_weights (B, Sq, Sk)).
    """
    B, Sq, Din = queries.shape
    _, Sk, _ = keys.shape
    Dk = wq.shape[0]
    Dv = wv.shape[0]
    Dout = wo.shape[0]
    dh = Dk // num_heads
    dvh = Dv // num_heads
    scale = float(dh) ** (-0.5)

    # --- linear projections (Pallas matmul kernels) ---
    q = linear_nobias(queries.reshape(B * Sq, Din), wq.T).reshape(B, Sq, Dk)
    k = linear_nobias(keys.reshape(B * Sk, Din), wk.T).reshape(B, Sk, Dk)
    v = linear_nobias(values.reshape(B * Sk, Din), wv.T).reshape(B, Sk, Dv)

    # --- split heads: (B, S, D) -> (B, H, S, D/H) ---
    qh = q.reshape(B, Sq, num_heads, dh).transpose(0, 2, 1, 3)
    kh = k.reshape(B, Sk, num_heads, dh).transpose(0, 2, 1, 3)
    vh = v.reshape(B, Sk, num_heads, dvh).transpose(0, 2, 1, 3)

    if mask is None:
        mask_f = jnp.zeros((B, Sq, Sk), jnp.float32)
    else:
        mask_f = mask.astype(jnp.float32)

    kernel = functools.partial(_mha_attn_kernel, scale=scale, inv_heads=1.0 / num_heads)

    ctx, attw = pl.pallas_call(
        kernel,
        out_shape=(
            jax.ShapeDtypeStruct((B, num_heads, Sq, dvh), queries.dtype),
            jax.ShapeDtypeStruct((B, Sq, Sk), jnp.float32),
        ),
        grid_spec=pltpu.PrefetchScalarGridSpec(
            num_scalar_prefetch=0,
            grid=(B, num_heads),
            in_specs=[
                pl.BlockSpec((None, None, Sq, dh), lambda b, h: (b, h, 0, 0)),
                pl.BlockSpec((None, None, Sk, dh), lambda b, h: (b, h, 0, 0)),
                pl.BlockSpec((None, None, Sk, dvh), lambda b, h: (b, h, 0, 0)),
                pl.BlockSpec((None, Sq, Sk), lambda b, h: (b, 0, 0)),
            ],
            out_specs=[
                pl.BlockSpec((None, None, Sq, dvh), lambda b, h: (b, h, 0, 0)),
                pl.BlockSpec((None, Sq, Sk), lambda b, h: (b, 0, 0)),
            ],
            scratch_shapes=[pltpu.VMEM((Sq, Sk), jnp.float32)],
        ),
        compiler_params=pltpu.CompilerParams(
            # batch axis shardable across cores; head axis carries the
            # attention-weight accumulator -> must be "arbitrary"
            dimension_semantics=("parallel", "arbitrary"),
            vmem_limit_bytes=48 * 1024 * 1024,
        ),
    )(qh, kh, vh, mask_f)

    # --- merge heads + output projection ---
    ctx_m = ctx.transpose(0, 2, 1, 3).reshape(B, Sq, Dv)
    out = linear_nobias(ctx_m.reshape(B * Sq, Dv), wo.T).reshape(B, Sq, Dout)
    return out, attw


# ---------------------------------------------------------------------------
# Pure-JAX reference mirroring the PyTorch forward (for verification)
# ---------------------------------------------------------------------------
def mha_ref(queries, keys, values, mask, wq, wk, wv, wo, num_heads):
    B, Sq, _ = queries.shape
    Dk = wq.shape[0]
    Dv = wv.shape[0]
    dh = Dk // num_heads
    dvh = Dv // num_heads
    q = queries @ wq.T
    k = keys @ wk.T
    v = values @ wv.T

    def split(x, d):
        return x.reshape(B, -1, num_heads, d).transpose(0, 2, 1, 3)

    qh = split(q, dh) * (float(dh) ** (-0.5))
    kh = split(k, dh)
    vh = split(v, dvh)
    logits = jnp.einsum("bhqd,bhkd->bhqk", qh, kh)
    if mask is not None:
        logits = jnp.where(mask[:, None, :, :], -1e18, logits)
    attw = logits.sum(axis=1) / num_heads
    w = jax.nn.softmax(logits, axis=-1)
    ctx = jnp.einsum("bhqk,bhkd->bhqd", w, vh)
    ctx = ctx.transpose(0, 2, 1, 3).reshape(B, Sq, Dv)
    out = ctx @ wo.T
    return out, attw


if __name__ == "__main__":
    key = jax.random.PRNGKey(0)
    batch, seq, input_depth = 2, 8, 32
    total_key_depth, total_value_depth, output_depth, num_heads = 32, 32, 32, 4

    k0, k1, k2, k3, k4, k5, k6 = jax.random.split(key, 7)
    queries = jax.random.normal(k0, (batch, seq, input_depth), dtype=jnp.float32)
    keys = jax.random.normal(k1, (batch, seq, input_depth), dtype=jnp.float32)
    values = jax.random.normal(k2, (batch, seq, input_depth), dtype=jnp.float32)

    # bias-free Linear weights in PyTorch layout (out_features, in_features)
    wq = jax.random.normal(k3, (total_key_depth, input_depth), dtype=jnp.float32) * 0.1
    wk = jax.random.normal(k4, (total_key_depth, input_depth), dtype=jnp.float32) * 0.1
    wv = jax.random.normal(k5, (total_value_depth, input_depth), dtype=jnp.float32) * 0.1
    wo = jax.random.normal(k6, (output_depth, total_value_depth), dtype=jnp.float32) * 0.1

    # causal-style boolean mask: True = masked (no attending to future positions)
    row = jnp.arange(seq)[:, None]
    col = jnp.arange(seq)[None, :]
    mask = jnp.broadcast_to(col > row, (batch, seq, seq))

    out, attw = multi_head_attention(
        queries, keys, values, mask, wq, wk, wv, wo, num_heads
    )
    out = jax.block_until_ready(out)
    attw = jax.block_until_ready(attw)

    ref_out, ref_attw = mha_ref(
        queries, keys, values, mask, wq, wk, wv, wo, num_heads
    )

    assert out.shape == (batch, seq, output_depth), out.shape
    assert attw.shape == (batch, seq, seq), attw.shape
    assert jnp.allclose(out, ref_out, atol=1e-4, rtol=1e-5), "output mismatch"
    assert jnp.allclose(attw, ref_attw, atol=1e-3, rtol=1e-5), "attn-weight mismatch"

    print("KERNEL_OK")
</pallas_src>

<mosaic_0001>
module attributes {stable_mosaic.version = 11 : i64} {
  func.func @_linear_kernel(%arg0: i32, %arg1: memref<16x32xf32, #tpu.memory_space<vmem>>, %arg2: memref<32x32xf32, #tpu.memory_space<vmem>>, %arg3: memref<16x32xf32, #tpu.memory_space<vmem>>) attributes {dimension_semantics = [#tpu.dimension_semantics<parallel>], iteration_bounds = array<i64: 1>, scalar_prefetch = 0 : i64, scratch_operands = 0 : i64, tpu.core_type = #tpu.core_type<tc>, window_params = [{transform_indices = @transform_0, window_bounds = array<i64: 16, 32>}, {pipeline_mode = #tpu.pipeline_mode<synchronous>, transform_indices = @transform_1, window_bounds = array<i64: 32, 32>}, {transform_indices = @transform_2, window_bounds = array<i64: 16, 32>}]} {
    %c0 = arith.constant 0 : index
    %c0_0 = arith.constant 0 : index
    %0 = vector.load %arg1[%c0, %c0_0] : memref<16x32xf32, #tpu.memory_space<vmem>>, vector<16x32xf32>
    %c0_1 = arith.constant 0 : index
    %c0_2 = arith.constant 0 : index
    %1 = vector.load %arg2[%c0_1, %c0_2] : memref<32x32xf32, #tpu.memory_space<vmem>>, vector<32x32xf32>
    %cst = arith.constant dense<0.000000e+00> : vector<16x32xf32>
    %2 = tpu.matmul %0, %1, %cst {dimension_numbers = #tpu.dot_dimension_numbers<[1], [0], [0], [1], [0, 0, 1, 1], [], []>} : vector<16x32xf32>, vector<32x32xf32>, vector<16x32xf32> -> vector<16x32xf32>
    %c0_3 = arith.constant 0 : index
    %c0_4 = arith.constant 0 : index
    %3 = vector.load %arg3[%c0_3, %c0_4] : memref<16x32xf32, #tpu.memory_space<vmem>>, vector<16x32xf32>
    tpu.vector_store %arg3[%c0_3, %c0_4], %2 {strides = array<i32>} : memref<16x32xf32, #tpu.memory_space<vmem>>, vector<16x32xf32>,
    return
  }
  func.func @transform_0(%arg0: i32) -> (i32, i32) {
    %c0_i32 = arith.constant 0 : i32
    %c0_i32_0 = arith.constant 0 : i32
    return %arg0, %c0_i32 : i32, i32
  }
  func.func @transform_1(%arg0: i32) -> (i32, i32) {
    %c0_i32 = arith.constant 0 : i32
    %c0_i32_0 = arith.constant 0 : i32
    %c0_i32_1 = arith.constant 0 : i32
    return %c0_i32, %c0_i32_0 : i32, i32
  }
  func.func @transform_2(%arg0: i32) -> (i32, i32) {
    %c0_i32 = arith.constant 0 : i32
    %c0_i32_0 = arith.constant 0 : i32
    return %arg0, %c0_i32 : i32, i32
  }
}

</mosaic_0001>

<llo_original>
// kernel: tpu_custom_call.1
$region0: #{tpu_custom_call.1}
  #allocation0 [shape = 'u32[]', space=smem, size = 0x4, offset = 0x4, fixed_abs, tag = 'smem constant byte address 0x4 - core index']
  #allocation1 [shape = 'u32[72,128]{1,0:T(1,128)}', space=vmem, size = 0x9000, scoped, tag = 'internal scratch']
  %s0 = inlined_call_operand.hbm [shape: f32[16,32], index: 0, kind: input, shape index: {}]
  %s1 = inlined_call_operand.hbm [shape: f32[32,32], index: 1, kind: input, shape index: {}]
  %s2 = inlined_call_operand.hbm [shape: f32[16,32], index: 2, kind: output, shape index: {}]
  %s3 = sld [smem:[#allocation0]]
  $region26: #{tpu_custom_call.1} parent=0
    _
  %s5 = ssub.s32 1, %s3
  %s6 = scalar_select 0, %s5, %s3
  $region1: #{tpu_custom_call.1} parent=0
    #allocation2 [shape = 'u8[8192]{0}', space=vmem, size = 0x2000, scoped, tag = 'input window, operand 0, single buffered']
    #allocation3 [shape = 's32[1]{0}', space=sflag, size = 0x4, scoped, tag = 'scoped memory for tpu_custom_call.1']
    #allocation4 [shape = 's32[1]{0}', space=sflag, size = 0x4, scoped, tag = 'scoped memory for tpu_custom_call.1']
    #allocation5 [shape = 'u8[16384]{0}', space=vmem, size = 0x4000, scoped, tag = 'input window, operand 1, single buffered']
    #allocation6 [shape = 's32[1]{0}', space=sflag, size = 0x4, scoped, tag = 'scoped memory for tpu_custom_call.1']
    #allocation7 [shape = 'u8[8192]{0}', space=vmem, size = 0x2000, scoped, tag = 'output window, operand 0, single buffered']
    %7 = vsyncpa [#allocation3], 0
    %8 = vsyncpa [#allocation6], 0
    %9 = vsyncpa [#allocation4], 0
    // Predicated region
    $region2: #{tpu_custom_call.1} parent=1 // pred_check
      _
    $region3: #{tpu_custom_call.1} parent=1 // pred_check_branch
      %11 = sbr.rel (0) target = $region5
    $region4: #{tpu_custom_call.1} parent=1 // pred_region
      %13 = vsyncadd [#allocation3], 0
      %s14 = sshll.u32 %s0, 4
      %s15 = int_to_ptr.hbm [resolvable:$true] %s14
      %s16 = sshll.u32 [#allocation2], 4
      %s17 = int_to_ptr.vmem [resolvable:$true] %s16
      %22 = dma.hbm_to_vmem [thread:$0]  %s15, 256, %s17, [#allocation3], 128, 128, 8
    $region5: #{tpu_custom_call.1} parent=1 // pred_fallthru
      _
    // Predicated region
    $region6: #{tpu_custom_call.1} parent=1 // pred_check
      _
    $region7: #{tpu_custom_call.1} parent=1 // pred_check_branch
      %24 = sbr.rel (0) target = $region9
    $region8: #{tpu_custom_call.1} parent=1 // pred_region
      %26 = vsyncadd [#allocation6], 0
      %s27 = sshll.u32 %s1, 4
      %s28 = int_to_ptr.hbm [resolvable:$true] %s27
      %s29 = sshll.u32 [#allocation5], 4
      %s30 = int_to_ptr.vmem [resolvable:$true] %s29
      %35 = dma.hbm_to_vmem [thread:$0]  %s28, 512, %s30, [#allocation6], 128, 128, 8
    $region9: #{tpu_custom_call.1} parent=1 // pred_fallthru
      _
    // Predicated region
    $region10: #{tpu_custom_call.1} parent=1 // pred_check
      _
    $region11: #{tpu_custom_call.1} parent=1 // pred_check_branch
      %37 = sbr.rel (0) target = $region13
    $region12: #{tpu_custom_call.1} parent=1 // pred_region
      %39 = dma.done [#allocation3], 256
    $region13: #{tpu_custom_call.1} parent=1 // pred_fallthru
      _
    // Predicated region
    $region14: #{tpu_custom_call.1} parent=1 // pred_check
      _
    $region15: #{tpu_custom_call.1} parent=1 // pred_check_branch
      %41 = sbr.rel (0) target = $region17
    $region16: #{tpu_custom_call.1} parent=1 // pred_region
      %43 = dma.done [#allocation6], 512
    $region17: #{tpu_custom_call.1} parent=1 // pred_fallthru
      _
    %v44 = vld [vmem:[#allocation2] sm:$0xff]
    %v45 = vld [vmem:[#allocation2 + $0x8] sm:$0xff]
    %v46 = vld [vmem:[#allocation5] sm:$0xff]
    %v47 = vld [vmem:[#allocation5 + $0x8] sm:$0xff]
    %v48 = vld [vmem:[#allocation5 + $0x10] sm:$0xff]
    %v49 = vld [vmem:[#allocation5 + $0x18] sm:$0xff]
    %vm50 = vcmask 261120
    %v52 = vsel %vm50, %v44, 0
    %v55 = vsel %vm50, %v45, 0
    %57 = vmatpush.msra.mxu0 0.0
    %58 = vmatpush.msra.mxu0 0.0
    %59 = vmatpush.msra.mxu0 0.0
    %60 = vmatpush.msra.mxu0 0.0
    %61 = vmatpush.msra.mxu0 0.0
    %62 = vmatpush.msra.mxu0 0.0
    %63 = vmatpush.msra.mxu0 0.0
    %64 = vmatpush.msra.mxu0 0.0
    %65 = vmatpush.msra.mxu0 0.0
    %66 = vmatpush.msra.mxu0 0.0
    %67 = vmatpush.msra.mxu0 0.0
    %68 = vmatpush.msra.mxu0 0.0
    %69 = vmatpush.msra.mxu0 %v49
    %70 = vmatpush.msra.mxu0 %v48
    %71 = vmatpush.msra.mxu0 %v47
    %72 = vmatpush.msra.mxu0 %v46
    %73 = vmatmul.f32.gmra.mxu0 %v52
    %v74 = vpop.f32.mrf.mxu0
    %v75 = vadd.f32 0.0, %v74
    %76 = vmatmul.f32.gmra.mxu0 %v55
    %v77 = vpop.f32.mrf.mxu0
    %v78 = vadd.f32 0.0, %v77
    %79 = vdwg.mxu0
    %80 = vst.msk [vmem:[#allocation7] sm:$0xff] %vm50, %v75
    %81 = vst.msk [vmem:[#allocation7 + $0x8] sm:$0xff] %vm50, %v78
    // Predicated region
    $region18: #{tpu_custom_call.1} parent=1 // pred_check
      _
    $region19: #{tpu_custom_call.1} parent=1 // pred_check_branch
      %83 = sbr.rel (0) target = $region21
    $region20: #{tpu_custom_call.1} parent=1 // pred_region
      %85 = vsyncadd [#allocation4], 0
      %s86 = sshll.u32 [#allocation7], 4
      %s87 = int_to_ptr.vmem [resolvable:$true] %s86
      %s88 = sshll.u32 %s2, 4
      %s89 = int_to_ptr.hbm [resolvable:$true] %s88
      %94 = dma.vmem_to_hbm [thread:$0]  %s87, 256, %s89, [#allocation4], 128, 128, 8
    $region21: #{tpu_custom_call.1} parent=1 // pred_fallthru
      _
    // Predicated region
    $region22: #{tpu_custom_call.1} parent=1 // pred_check
      _
    $region23: #{tpu_custom_call.1} parent=1 // pred_check_branch
      %96 = sbr.rel (0) target = $region25
    $region24: #{tpu_custom_call.1} parent=1 // pred_region
      %98 = dma.done [#allocation4], 256
    $region25: #{tpu_custom_call.1} parent=1 // pred_fallthru
      _
    %99 = vsyncpa [#allocation3], 1
    %100 = vsyncpa [#allocation6], 1
    %101 = vsyncpa [#allocation4], 1

</llo_original>
